<compile_context>
chip_gen: v7x
topology: tpu7x:2x2x1
jax: 0.10.0
libtpu: 0.0.40
codegen_flags: <defaults>
</compile_context>

<pallas_src>
import functools

import jax
import jax.numpy as jnp
from jax import lax
from jax.experimental import pallas as pl
from jax.experimental.pallas import tpu as pltpu

BN_EPS = 1e-5  # torch.nn.BatchNorm1d default


def encoder_bn_kernel(a_ref, w_ref, o_ref, *, n_tokens, inout_c):
    a = a_ref[...]             # (M, C+G)  [x2 | gf_rep]
    w = w_ref[...]             # (C+G, 3C) [[W_Q^T | W_V^T | 0], [0 | 0 | W_g^T]]

    M = a.shape[0]
    C = inout_c
    inv_m = 1.0 / M

    x2 = a[:, :C]              # flattened (B*N, C) input (static lane slice)

    # ---- fused Q/V/global projection: one (M, C+G) @ (C+G, 3C) MXU matmul ----
    qvg = jnp.dot(a, w, preferred_element_type=jnp.float32)             # (M, 3C)

    # ---- single BatchNorm1d (training, affine=False) over all 3C columns ----
    mean = jnp.sum(qvg, axis=0, keepdims=True) * inv_m
    cen = qvg - mean
    var = jnp.sum(cen * cen, axis=0, keepdims=True) * inv_m             # biased var
    qvg_n = cen * lax.rsqrt(var + BN_EPS)

    q = qvg_n[:, :C] * 0.05    # fold the 0.05 attention scale into q (0.05 > 0)
    v = qvg_n[:, C:2 * C]
    g_n = qvg_n[:, 2 * C:]     # replicated rows == per-batch BN of the global branch

    # ---- attention scores: x2 @ q^T via dot_general (no explicit transpose) ----
    s = lax.dot_general(x2, q, (((1,), (1,)), ((), ())),
                        preferred_element_type=jnp.float32)             # (M, M)

    # same-batch (block-diagonal) mask from thin iotas; shift instead of divide
    if (n_tokens & (n_tokens - 1)) == 0:
        shift = n_tokens.bit_length() - 1
        row_b = lax.broadcasted_iota(jnp.int32, (M, 1), 0) >> shift
        col_b = lax.broadcasted_iota(jnp.int32, (1, M), 1) >> shift
    else:
        row_b = lax.broadcasted_iota(jnp.int32, (M, 1), 0) // n_tokens
        col_b = lax.broadcasted_iota(jnp.int32, (1, M), 1) // n_tokens
    att = jnp.where(row_b == col_b, jnp.maximum(s, 0.0), 0.0)           # ≡ torch.bmm

    y = jnp.dot(att, v, preferred_element_type=jnp.float32)             # (M, C)

    y = jnp.maximum(y + g_n, 0.0)                                       # relu
    y = y + x2                                                          # residual
    o_ref[...] = y.astype(o_ref.dtype)


def encoder_layer_simple_bn(x, gf, w_q, w_v, w_global):
    """x: (B, N, C) f32, gf: (B, G) f32, weights in torch nn.Linear layout (out, in)."""
    B, N, C = x.shape
    G = gf.shape[1]
    M = B * N

    # Wrapper-side glue (cheap XLA ops): flatten tokens, repeat gf per token,
    # build one activation slab and one block-diagonal weight slab so the
    # kernel needs exactly two input DMAs and a single projection matmul.
    x2 = x.reshape(M, C)
    gf_rep = jnp.repeat(gf, N, axis=0)                                   # (M, G)
    a = jnp.concatenate([x2, gf_rep], axis=1)                            # (M, C+G)

    top = jnp.concatenate([w_q.T, w_v.T, jnp.zeros((C, C), x.dtype)], axis=1)    # (C, 3C)
    bot = jnp.concatenate([jnp.zeros((G, 2 * C), x.dtype), w_global.T], axis=1)  # (G, 3C)
    w = jnp.concatenate([top, bot], axis=0)                                      # (C+G, 3C)

    kernel = functools.partial(encoder_bn_kernel, n_tokens=N, inout_c=C)

    # No grid: whole problem in one step (required for batch-stat BN), so skip
    # pipeline scaffolding entirely.  If many same-shape instances are run,
    # batch them with a leading "parallel" grid axis instead of separate calls.
    out2 = pl.pallas_call(
        kernel,
        out_shape=jax.ShapeDtypeStruct((M, C), x.dtype),
        in_specs=[
            pl.BlockSpec(memory_space=pltpu.MemorySpace.VMEM),   # activation slab
            pl.BlockSpec(memory_space=pltpu.MemorySpace.VMEM),   # fused weight slab
        ],
        out_specs=pl.BlockSpec(memory_space=pltpu.MemorySpace.VMEM),
        compiler_params=pltpu.CompilerParams(
            vmem_limit_bytes=32 * 1024 * 1024),
    )(a, w)

    return out2.reshape(B, N, C)


def encoder_layer_simple_bn_ref(x, gf, w_q, w_v, w_global, eps=BN_EPS):
    """Pure-JAX reference matching the PyTorch forward (training-mode BN)."""
    B, N, C = x.shape

    def bn(z):
        m = z.mean(axis=0, keepdims=True)
        v = jnp.mean((z - m) ** 2, axis=0, keepdims=True)
        return (z - m) / jnp.sqrt(v + eps)

    y2 = x.reshape(B * N, C)
    q = bn(y2 @ w_q.T).reshape(B, N, C)
    v = bn(y2 @ w_v.T).reshape(B, N, C)
    att = jnp.maximum(jnp.einsum('bnc,bmc->bnm', x, q), 0.0) * 0.05
    y = jnp.einsum('bnm,bmc->bnc', att, v)
    g = bn(gf @ w_global.T)                              # (B, C)
    y = jnp.maximum(y + g[:, None, :], 0.0)
    y = y + x
    return y


if __name__ == "__main__":
    B, N, C, G = 2, 8, 32, 16

    key = jax.random.PRNGKey(0)
    kx, kg, k1, k2, k3 = jax.random.split(key, 5)

    x = jax.random.normal(kx, (B, N, C), dtype=jnp.float32)
    gf = jax.random.normal(kg, (B, G), dtype=jnp.float32)

    # nn.Linear weight layout = (out_features, in_features), bias=False
    w_q = jax.random.normal(k1, (C, C), dtype=jnp.float32) * (1.0 / jnp.sqrt(C))
    w_v = jax.random.normal(k2, (C, C), dtype=jnp.float32) * (1.0 / jnp.sqrt(C))
    w_global = jax.random.normal(k3, (C, G), dtype=jnp.float32) * (1.0 / jnp.sqrt(G))

    out = encoder_layer_simple_bn(x, gf, w_q, w_v, w_global)
    out = jax.block_until_ready(out)

    ref = encoder_layer_simple_bn_ref(x, gf, w_q, w_v, w_global)
    assert out.shape == (B, N, C)
    assert jnp.allclose(out, ref, atol=1e-3, rtol=1e-3), "mismatch vs reference"

    print("KERNEL_OK")
</pallas_src>

<mosaic_0001>
module attributes {stable_mosaic.version = 11 : i64} {
  func.func @encoder_bn_kernel(%arg0: memref<16x48xf32, #tpu.memory_space<vmem>>, %arg1: memref<48x96xf32, #tpu.memory_space<vmem>>, %arg2: memref<16x32xf32, #tpu.memory_space<vmem>>) attributes {dimension_semantics = [], scalar_prefetch = 0 : i64, scratch_operands = 0 : i64, tpu.core_type = #tpu.core_type<tc>} {
    %c0 = arith.constant 0 : index
    %c0_0 = arith.constant 0 : index
    %0 = vector.load %arg0[%c0, %c0_0] : memref<16x48xf32, #tpu.memory_space<vmem>>, vector<16x48xf32>
    %c0_1 = arith.constant 0 : index
    %c0_2 = arith.constant 0 : index
    %1 = vector.load %arg1[%c0_1, %c0_2] : memref<48x96xf32, #tpu.memory_space<vmem>>, vector<48x96xf32>
    %2 = vector.extract_strided_slice %0 {offsets = [0, 0], sizes = [16, 32], strides = [1, 1]} : vector<16x48xf32> to vector<16x32xf32>
    %cst = arith.constant dense<0.000000e+00> : vector<16x96xf32>
    %3 = tpu.matmul %0, %1, %cst {dimension_numbers = #tpu.dot_dimension_numbers<[1], [0], [0], [1], [0, 0, 1, 1], [], []>} : vector<16x48xf32>, vector<48x96xf32>, vector<16x96xf32> -> vector<16x96xf32>
    %cst_3 = arith.constant dense<0.000000e+00> : vector<96xf32>
    %4 = vector.multi_reduction <add>, %3, %cst_3 [0] : vector<16x96xf32> to vector<96xf32>
    %5 = vector.shape_cast %4 : vector<96xf32> to vector<1x96xf32>
    %cst_4 = arith.constant 6.250000e-02 : f32
    %6 = vector.broadcast %cst_4 : f32 to vector<1x96xf32>
    %7 = arith.mulf %5, %6 : vector<1x96xf32>
    %8 = vector.broadcast %7 : vector<1x96xf32> to vector<16x96xf32>
    %9 = arith.subf %3, %8 : vector<16x96xf32>
    %10 = arith.mulf %9, %9 : vector<16x96xf32>
    %cst_5 = arith.constant dense<0.000000e+00> : vector<96xf32>
    %11 = vector.multi_reduction <add>, %10, %cst_5 [0] : vector<16x96xf32> to vector<96xf32>
    %12 = vector.shape_cast %11 : vector<96xf32> to vector<1x96xf32>
    %cst_6 = arith.constant 6.250000e-02 : f32
    %13 = vector.broadcast %cst_6 : f32 to vector<1x96xf32>
    %14 = arith.mulf %12, %13 : vector<1x96xf32>
    %cst_7 = arith.constant 9.99999974E-6 : f32
    %15 = vector.broadcast %cst_7 : f32 to vector<1x96xf32>
    %16 = arith.addf %14, %15 : vector<1x96xf32>
    %17 = math.rsqrt %16 : vector<1x96xf32>
    %18 = vector.broadcast %17 : vector<1x96xf32> to vector<16x96xf32>
    %19 = arith.mulf %9, %18 : vector<16x96xf32>
    %20 = vector.extract_strided_slice %19 {offsets = [0, 0], sizes = [16, 32], strides = [1, 1]} : vector<16x96xf32> to vector<16x32xf32>
    %cst_8 = arith.constant 5.000000e-02 : f32
    %21 = vector.broadcast %cst_8 : f32 to vector<16x32xf32>
    %22 = arith.mulf %20, %21 : vector<16x32xf32>
    %23 = vector.extract_strided_slice %19 {offsets = [0, 32], sizes = [16, 32], strides = [1, 1]} : vector<16x96xf32> to vector<16x32xf32>
    %24 = vector.extract_strided_slice %19 {offsets = [0, 64], sizes = [16, 32], strides = [1, 1]} : vector<16x96xf32> to vector<16x32xf32>
    %cst_9 = arith.constant dense<0.000000e+00> : vector<16x16xf32>
    %25 = tpu.matmul %2, %22, %cst_9 {dimension_numbers = #tpu.dot_dimension_numbers<[1], [1], [0], [0], [0, 0, 1, 0], [], []>} : vector<16x32xf32>, vector<16x32xf32>, vector<16x16xf32> -> vector<16x16xf32>
    %26 = tpu.iota {dimensions = array<i32: 0>} : vector<16x1xi32>
    %c3_i32 = arith.constant 3 : i32
    %27 = vector.broadcast %c3_i32 : i32 to vector<16x1xi32>
    %28 = arith.shrsi %26, %27 : vector<16x1xi32>
    %29 = tpu.iota {dimensions = array<i32: 1>} : vector<1x16xi32>
    %c3_i32_10 = arith.constant 3 : i32
    %30 = vector.broadcast %c3_i32_10 : i32 to vector<1x16xi32>
    %31 = arith.shrsi %29, %30 : vector<1x16xi32>
    %32 = vector.broadcast %28 : vector<16x1xi32> to vector<16x16xi32>
    %33 = vector.broadcast %31 : vector<1x16xi32> to vector<16x16xi32>
    %34 = arith.cmpi eq, %32, %33 : vector<16x16xi32>
    %cst_11 = arith.constant 0.000000e+00 : f32
    %35 = vector.broadcast %cst_11 : f32 to vector<16x16xf32>
    %36 = arith.maximumf %25, %35 : vector<16x16xf32>
    %cst_12 = arith.constant 0.000000e+00 : f32
    %37 = vector.broadcast %cst_12 : f32 to vector<16x16xf32>
    %38 = arith.select %34, %36, %37 : vector<16x16xi1>, vector<16x16xf32>
    %cst_13 = arith.constant dense<0.000000e+00> : vector<16x32xf32>
    %39 = tpu.matmul %38, %23, %cst_13 {dimension_numbers = #tpu.dot_dimension_numbers<[1], [0], [0], [1], [0, 0, 1, 1], [], []>} : vector<16x16xf32>, vector<16x32xf32>, vector<16x32xf32> -> vector<16x32xf32>
    %40 = arith.addf %39, %24 : vector<16x32xf32>
    %cst_14 = arith.constant 0.000000e+00 : f32
    %41 = vector.broadcast %cst_14 : f32 to vector<16x32xf32>
    %42 = arith.maximumf %40, %41 : vector<16x32xf32>
    %43 = arith.addf %42, %2 : vector<16x32xf32>
    %c0_15 = arith.constant 0 : index
    %c0_16 = arith.constant 0 : index
    %44 = vector.load %arg2[%c0_15, %c0_16] : memref<16x32xf32, #tpu.memory_space<vmem>>, vector<16x32xf32>
    tpu.vector_store %arg2[%c0_15, %c0_16], %43 {strides = array<i32>} : memref<16x32xf32, #tpu.memory_space<vmem>>, vector<16x32xf32>,
    return
  }
}

</mosaic_0001>

<llo_original>
// kernel: tpu_custom_call.1
$region0: #{tpu_custom_call.1}
  #allocation0 [shape = 'u32[]', space=smem, size = 0x4, offset = 0x4, fixed_abs, tag = 'smem constant byte address 0x4 - core index']
  #allocation1 [shape = 'u32[144,128]{1,0:T(1,128)}', space=vmem, size = 0x12000, scoped, tag = 'internal scratch']
  %s0 = inlined_call_operand.hbm [shape: f32[16,48], index: 0, kind: input, shape index: {}]
  %s1 = inlined_call_operand.hbm [shape: f32[48,96], index: 1, kind: input, shape index: {}]
  %s2 = inlined_call_operand.hbm [shape: f32[16,32], index: 2, kind: output, shape index: {}]
  %s3 = sld [smem:[#allocation0]]
  $region26: #{tpu_custom_call.1} parent=0
    _
  %s5 = ssub.s32 1, %s3
  %s6 = scalar_select 0, %s5, %s3
  $region1: #{tpu_custom_call.1} parent=0
    #allocation2 [shape = 'u8[8192]{0}', space=vmem, size = 0x2000, scoped, tag = 'input window, operand 0, single buffered']
    #allocation3 [shape = 's32[1]{0}', space=sflag, size = 0x4, scoped, tag = 'scoped memory for tpu_custom_call.1']
    #allocation4 [shape = 's32[1]{0}', space=sflag, size = 0x4, scoped, tag = 'scoped memory for tpu_custom_call.1']
    #allocation5 [shape = 'u8[24576]{0}', space=vmem, size = 0x6000, scoped, tag = 'input window, operand 1, single buffered']
    #allocation6 [shape = 's32[1]{0}', space=sflag, size = 0x4, scoped, tag = 'scoped memory for tpu_custom_call.1']
    #allocation7 [shape = 'u8[8192]{0}', space=vmem, size = 0x2000, scoped, tag = 'output window, operand 0, single buffered']
    %7 = vsyncpa [#allocation3], 0
    %8 = vsyncpa [#allocation6], 0
    %9 = vsyncpa [#allocation4], 0
    // Predicated region
    $region2: #{tpu_custom_call.1} parent=1 // pred_check
      _
    $region3: #{tpu_custom_call.1} parent=1 // pred_check_branch
      %11 = sbr.rel (0) target = $region5
    $region4: #{tpu_custom_call.1} parent=1 // pred_region
      %s13 = ssub.s32 256, 256
      %14 = vsyncadd [#allocation3], %s13
      %s15 = sshll.u32 [#allocation2], 4
      %s16 = int_to_ptr.vmem [resolvable:$true] %s15
      %21 = dma.hbm_to_vmem [thread:$0]  %s0, 256, %s16, [#allocation3], 128, 128, 8
    $region5: #{tpu_custom_call.1} parent=1 // pred_fallthru
      _
    // Predicated region
    $region6: #{tpu_custom_call.1} parent=1 // pred_check
      _
    $region7: #{tpu_custom_call.1} parent=1 // pred_check_branch
      %23 = sbr.rel (0) target = $region9
    $region8: #{tpu_custom_call.1} parent=1 // pred_region
      %s25 = ssub.s32 768, 768
      %26 = vsyncadd [#allocation6], %s25
      %s27 = sshll.u32 [#allocation5], 4
      %s28 = int_to_ptr.vmem [resolvable:$true] %s27
      %33 = dma.hbm_to_vmem [thread:$0]  %s1, 768, %s28, [#allocation6], 128, 128, 8
    $region9: #{tpu_custom_call.1} parent=1 // pred_fallthru
      _
    // Predicated region
    $region10: #{tpu_custom_call.1} parent=1 // pred_check
      _
    $region11: #{tpu_custom_call.1} parent=1 // pred_check_branch
      %35 = sbr.rel (0) target = $region13
    $region12: #{tpu_custom_call.1} parent=1 // pred_region
      %36 = dma.done [#allocation3], 256
    $region13: #{tpu_custom_call.1} parent=1 // pred_fallthru
      _
    // Predicated region
    $region14: #{tpu_custom_call.1} parent=1 // pred_check
      _
    $region15: #{tpu_custom_call.1} parent=1 // pred_check_branch
      %38 = sbr.rel (0) target = $region17
    $region16: #{tpu_custom_call.1} parent=1 // pred_region
      %39 = dma.done [#allocation6], 768
    $region17: #{tpu_custom_call.1} parent=1 // pred_fallthru
      _
    %v40 = vld [vmem:[#allocation2] sm:$0xff]
    %v41 = vld [vmem:[#allocation2 + $0x8] sm:$0xff]
    %v42 = vld [vmem:[#allocation5] sm:$0xff]
    %v43 = vld [vmem:[#allocation5 + $0x8] sm:$0xff]
    %v44 = vld [vmem:[#allocation5 + $0x10] sm:$0xff]
    %v45 = vld [vmem:[#allocation5 + $0x18] sm:$0xff]
    %v46 = vld [vmem:[#allocation5 + $0x20] sm:$0xff]
    %v47 = vld [vmem:[#allocation5 + $0x28] sm:$0xff]
    %vm48 = vcmask 392192
    %v50 = vsel %vm48, %v40, 0
    %v53 = vsel %vm48, %v41, 0
    %55 = vmatprep.subr.mxu0 0.0
    %56 = vmatpush1.msra.mxu0 %v42
    %57 = vmatprep.subr.mxu0 0.0
    %58 = vmatpush1.msra.mxu0 %v43
    %59 = vmatprep.subr.mxu0 0.0
    %60 = vmatpush1.msra.mxu0 %v44
    %61 = vmatprep.subr.mxu0 0.0
    %62 = vmatpush1.msra.mxu0 %v45
    %63 = vmatprep.subr.mxu0 0.0
    %64 = vmatpush1.msra.mxu0 %v46
    %65 = vmatprep.subr.mxu0 0.0
    %66 = vmatpush1.msra.mxu0 %v47
    %67 = vmatprep.subr.mxu0 0.0
    %68 = vmatpush1.msra.mxu0 0.0
    %69 = vmatprep.subr.mxu0 0.0
    %70 = vmatpush1.msra.mxu0 0.0
    %71 = vmatprep.subr.mxu0 0.0
    %72 = vmatpush1.msra.mxu0 0.0
    %73 = vmatprep.subr.mxu0 0.0
    %74 = vmatpush1.msra.mxu0 0.0
    %75 = vmatprep.subr.mxu0 0.0
    %76 = vmatpush1.msra.mxu0 0.0
    %77 = vmatprep.subr.mxu0 0.0
    %78 = vmatpush1.msra.mxu0 0.0
    %79 = vmatprep.subr.mxu0 0.0
    %80 = vmatpush1.msra.mxu0 0.0
    %81 = vmatprep.subr.mxu0 0.0
    %82 = vmatpush1.msra.mxu0 0.0
    %83 = vmatprep.subr.mxu0 0.0
    %84 = vmatpush1.msra.mxu0 0.0
    %85 = vmatprep.subr.mxu0 0.0
    %86 = vmatpush1.msra.mxu0 0.0
    %87 = vmatprep.subr.mxu0 0.0
    %88 = vmatpush1.msra.mxu0 0.0
    %89 = vmatprep.subr.mxu0 0.0
    %90 = vmatpush1.msra.mxu0 0.0
    %91 = vmatprep.subr.mxu0 0.0
    %92 = vmatpush1.msra.mxu0 0.0
    %93 = vmatprep.subr.mxu0 0.0
    %94 = vmatpush1.msra.mxu0 0.0
    %95 = vmatprep.subr.mxu0 0.0
    %96 = vmatpush1.msra.mxu0 0.0
    %97 = vmatprep.subr.mxu0 0.0
    %98 = vmatpush1.msra.mxu0 0.0
    %99 = vmatprep.subr.mxu0 0.0
    %100 = vmatpush1.msra.mxu0 0.0
    %101 = vmatprep.subr.mxu0 0.0
    %102 = vmatpush1.msra.mxu0 0.0
    %103 = vmatprep.subr.mxu0 0.0
    %104 = vmatpush1.msra.mxu0 0.0
    %105 = vmatprep.subr.mxu0 0.0
    %106 = vmatpush1.msra.mxu0 0.0
    %107 = vmatprep.subr.mxu0 0.0
    %108 = vmatpush1.msra.mxu0 0.0
    %109 = vmatprep.subr.mxu0 0.0
    %110 = vmatpush1.msra.mxu0 0.0
    %111 = vmatprep.subr.mxu0 0.0
    %112 = vmatpush1.msra.mxu0 0.0
    %113 = vmatprep.subr.mxu0 0.0
    %114 = vmatpush1.msra.mxu0 0.0
    %115 = vmatprep.subr.mxu0 0.0
    %116 = vmatpush1.msra.mxu0 0.0
    %117 = vmatprep.subr.mxu0 0.0
    %118 = vmatpush1.msra.mxu0 0.0
    %119 = vmatprep.mubr.f32.mxu0 0.0
    %120 = vmatmul.mubr.f32.gmra.mrb[0].mxu0 %v50
    %v121 = vpop.f32.mrb[0].mxu0
    %v122 = vadd.f32 0.0, %v121
    %v123 = vpop.f32.mrb[0].mxu0
    %124 = vmatprep.mubr.f32.mxu0 0.0
    %125 = vmatmul.mubr.f32.gmra.mrb[0].mxu0 %v53
    %v126 = vpop.f32.mrb[0].mxu0
    %v127 = vadd.f32 0.0, %v126
    %v128 = vpop.f32.mrb[0].mxu0
    %129 = vdwg.mxu0
    %vm130 = vcmask 785408
    %v131 = vsel %vm130, %v122, 0.0
    %v132 = vsel %vm130, %v127, 0.0
    %v133 = vadd.f32 %v131, %v132
    %v134 = vrot.slane %v133, 4
    %v135 = vadd.f32 %v133, %v134
    %v136 = vrot.slane %v135, 2
    %v137 = vadd.f32 %v135, %v136
    %v138 = vrot.slane %v137, 1
    %v139 = vadd.f32 %v137, %v138
    %v140 = vmul.f32 %v139, 0.0625
    %v141 = vsub.f32 %v122, %v140
    %v142 = vsub.f32 %v127, %v140
    %v143 = vmul.f32 %v141, %v141
    %v144 = vmul.f32 %v142, %v142
    %v145 = vsel %vm130, %v143, 0.0
    %v146 = vsel %vm130, %v144, 0.0
    %v147 = vadd.f32 %v145, %v146
    %v148 = vrot.slane %v147, 4
    %v149 = vadd.f32 %v147, %v148
    %v150 = vrot.slane %v149, 2
    %v151 = vadd.f32 %v149, %v150
    %v152 = vrot.slane %v151, 1
    %v153 = vadd.f32 %v151, %v152
    %v154 = vmul.f32 %v153, 0.0625
    %v155 = vadd.f32 %v154, 1e-05
    %v156 = vrsqrt.pop %v155
    %v157 = vmul.f32 %v141, %v156
    %v158 = vmul.f32 %v142, %v156
    %v159 = vmul.f32 %v157, 0.05
    %v160 = vmul.f32 %v158, 0.05
    %vm161 = vcmask 261120
    %v162 = vsel %vm161, %v40, 0
    %v164 = vsel %vm161, %v41, 0
    %v167 = vsel %vm161, %v159, 0
    %v170 = vsel %vm161, %v160, 0
    %172 = vmatprep.subr.mxu0 0.0
    %173 = vmatpush1.xpose.msra.mxu0 %v167
    %174 = vmatprep.subr.mxu0 0.0
    %175 = vmatpush1.xpose.msra.mxu0 %v170
    %176 = vmatprep.subr.mxu0 0.0
    %177 = vmatpush1.xpose.msra.mxu0 0.0
    %178 = vmatprep.subr.mxu0 0.0
    %179 = vmatpush1.xpose.msra.mxu0 0.0
    %180 = vmatprep.subr.mxu0 0.0
    %181 = vmatpush1.xpose.msra.mxu0 0.0
    %182 = vmatprep.subr.mxu0 0.0
    %183 = vmatpush1.xpose.msra.mxu0 0.0
    %184 = vmatprep.subr.mxu0 0.0
    %185 = vmatpush1.xpose.msra.mxu0 0.0
    %186 = vmatprep.subr.mxu0 0.0
    %187 = vmatpush1.xpose.msra.mxu0 0.0
    %188 = vmatprep.subr.mxu0 0.0
    %189 = vmatpush1.xpose.msra.mxu0 0.0
    %190 = vmatprep.subr.mxu0 0.0
    %191 = vmatpush1.xpose.msra.mxu0 0.0
    %192 = vmatprep.subr.mxu0 0.0
    %193 = vmatpush1.xpose.msra.mxu0 0.0
    %194 = vmatprep.subr.mxu0 0.0
    %195 = vmatpush1.xpose.msra.mxu0 0.0
    %196 = vmatprep.subr.mxu0 0.0
    %197 = vmatpush1.xpose.msra.mxu0 0.0
    %198 = vmatprep.subr.mxu0 0.0
    %199 = vmatpush1.xpose.msra.mxu0 0.0
    %200 = vmatprep.subr.mxu0 0.0
    %201 = vmatpush1.xpose.msra.mxu0 0.0
    %202 = vmatprep.subr.mxu0 0.0
    %203 = vmatpush1.xpose.msra.mxu0 0.0
    %204 = vmatprep.subr.mxu0 0.0
    %205 = vmatpush1.xpose.msra.mxu0 0.0
    %206 = vmatprep.subr.mxu0 0.0
    %207 = vmatpush1.xpose.msra.mxu0 0.0
    %208 = vmatprep.subr.mxu0 0.0
    %209 = vmatpush1.xpose.msra.mxu0 0.0
    %210 = vmatprep.subr.mxu0 0.0
    %211 = vmatpush1.xpose.msra.mxu0 0.0
    %212 = vmatprep.subr.mxu0 0.0
    %213 = vmatpush1.xpose.msra.mxu0 0.0
    %214 = vmatprep.subr.mxu0 0.0
    %215 = vmatpush1.xpose.msra.mxu0 0.0
    %216 = vmatprep.subr.mxu0 0.0
    %217 = vmatpush1.xpose.msra.mxu0 0.0
    %218 = vmatprep.subr.mxu0 0.0
    %219 = vmatpush1.xpose.msra.mxu0 0.0
    %220 = vmatprep.subr.mxu0 0.0
    %221 = vmatpush1.xpose.msra.mxu0 0.0
    %222 = vmatprep.subr.mxu0 0.0
    %223 = vmatpush1.xpose.msra.mxu0 0.0
    %224 = vmatprep.subr.mxu0 0.0
    %225 = vmatpush1.xpose.msra.mxu0 0.0
    %226 = vmatprep.subr.mxu0 0.0
    %227 = vmatpush1.xpose.msra.mxu0 0.0
    %228 = vmatprep.subr.mxu0 0.0
    %229 = vmatpush1.xpose.msra.mxu0 0.0
    %230 = vmatprep.subr.mxu0 0.0
    %231 = vmatpush1.xpose.msra.mxu0 0.0
    %232 = vmatprep.subr.mxu0 0.0
    %233 = vmatpush1.xpose.msra.mxu0 0.0
    %234 = vmatprep.subr.mxu0 0.0
    %235 = vmatpush1.xpose.msra.mxu0 0.0
    %236 = vmatprep.mubr.f32.mxu0 0.0
    %237 = vmatmul.mubr.f32.gmra.mrb[0].mxu0 %v162
    %v238 = vpop.f32.mrb[0].mxu0
    %v239 = vadd.f32 0.0, %v238
    %v240 = vpop.f32.mrb[0].mxu0
    %241 = vmatprep.mubr.f32.mxu0 0.0
    %242 = vmatmul.mubr.f32.gmra.mrb[0].mxu0 %v164
    %v243 = vpop.f32.mrb[0].mxu0
    %v244 = vadd.f32 0.0, %v243
    %v245 = vpop.f32.mrb[0].mxu0
    %246 = vdwg.mxu0
    %v247 = vlaneseq
    %v248 = vshrl.u32 %v247, 7
    %v249 = vadd.s32 %v248, 8
    %v250 = vshra.s32 %v248, 3
    %v251 = vshra.s32 %v249, 3
    %v252 = vlaneseq
    %v253 = vand.u32 %v252, 127
    %v254 = vshra.s32 %v253, 3
    %vm255 = vcmp.eq.s32.totalorder %v250, %v254
    %vm256 = vcmp.eq.s32.totalorder %v251, %v254
    %v257 = vmax.f32 %v239, 0.0
    %v258 = vmax.f32 %v244, 0.0
    %v259 = vsel %vm255, %v257, 0.0
    %v260 = vsel %vm256, %v258, 0.0
    %263 = vrot.lane.b32.xlu0 %v157, 96
    %v264 = vpop.permute.xlu0 %263
    %265 = vrot.lane.b32.xlu0 %v158, 96
    %v266 = vpop.permute.xlu0 %265
    %269 = vrot.lane.b32.xlu0 %v157, 64
    %v270 = vpop.permute.xlu0 %269
    %271 = vrot.lane.b32.xlu0 %v158, 64
    %v272 = vpop.permute.xlu0 %271
    %vm275 = vcmask 130048
    %v277 = vsel %vm275, %v259, 0
    %v280 = vsel %vm275, %v260, 0
    %282 = vmatprep.subr.mxu0 0.0
    %283 = vmatpush1.msra.mxu0 %v264
    %284 = vmatprep.subr.mxu0 0.0
    %285 = vmatpush1.msra.mxu0 %v266
    %286 = vmatprep.subr.mxu0 0.0
    %287 = vmatpush1.msra.mxu0 0.0
    %288 = vmatprep.subr.mxu0 0.0
    %289 = vmatpush1.msra.mxu0 0.0
    %290 = vmatprep.subr.mxu0 0.0
    %291 = vmatpush1.msra.mxu0 0.0
    %292 = vmatprep.subr.mxu0 0.0
    %293 = vmatpush1.msra.mxu0 0.0
    %294 = vmatprep.subr.mxu0 0.0
    %295 = vmatpush1.msra.mxu0 0.0
    %296 = vmatprep.subr.mxu0 0.0
    %297 = vmatpush1.msra.mxu0 0.0
    %298 = vmatprep.subr.mxu0 0.0
    %299 = vmatpush1.msra.mxu0 0.0
    %300 = vmatprep.subr.mxu0 0.0
    %301 = vmatpush1.msra.mxu0 0.0
    %302 = vmatprep.subr.mxu0 0.0
    %303 = vmatpush1.msra.mxu0 0.0
    %304 = vmatprep.subr.mxu0 0.0
    %305 = vmatpush1.msra.mxu0 0.0
    %306 = vmatprep.subr.mxu0 0.0
    %307 = vmatpush1.msra.mxu0 0.0
    %308 = vmatprep.subr.mxu0 0.0
    %309 = vmatpush1.msra.mxu0 0.0
    %310 = vmatprep.subr.mxu0 0.0
    %311 = vmatpush1.msra.mxu0 0.0
    %312 = vmatprep.subr.mxu0 0.0
    %313 = vmatpush1.msra.mxu0 0.0
    %314 = vmatprep.subr.mxu0 0.0
    %315 = vmatpush1.msra.mxu0 0.0
    %316 = vmatprep.subr.mxu0 0.0
    %317 = vmatpush1.msra.mxu0 0.0
    %318 = vmatprep.subr.mxu0 0.0
    %319 = vmatpush1.msra.mxu0 0.0
    %320 = vmatprep.subr.mxu0 0.0
    %321 = vmatpush1.msra.mxu0 0.0
    %322 = vmatprep.subr.mxu0 0.0
    %323 = vmatpush1.msra.mxu0 0.0
    %324 = vmatprep.subr.mxu0 0.0
    %325 = vmatpush1.msra.mxu0 0.0
    %326 = vmatprep.subr.mxu0 0.0
    %327 = vmatpush1.msra.mxu0 0.0
    %328 = vmatprep.subr.mxu0 0.0
    %329 = vmatpush1.msra.mxu0 0.0
    %330 = vmatprep.subr.mxu0 0.0
    %331 = vmatpush1.msra.mxu0 0.0
    %332 = vmatprep.subr.mxu0 0.0
    %333 = vmatpush1.msra.mxu0 0.0
    %334 = vmatprep.subr.mxu0 0.0
    %335 = vmatpush1.msra.mxu0 0.0
    %336 = vmatprep.subr.mxu0 0.0
    %337 = vmatpush1.msra.mxu0 0.0
    %338 = vmatprep.subr.mxu0 0.0
    %339 = vmatpush1.msra.mxu0 0.0
    %340 = vmatprep.subr.mxu0 0.0
    %341 = vmatpush1.msra.mxu0 0.0
    %342 = vmatprep.subr.mxu0 0.0
    %343 = vmatpush1.msra.mxu0 0.0
    %344 = vmatprep.subr.mxu0 0.0
    %345 = vmatpush1.msra.mxu0 0.0
    %346 = vmatprep.mubr.f32.mxu0 0.0
    %347 = vmatmul.mubr.f32.gmra.mrb[0].mxu0 %v277
    %v348 = vpop.f32.mrb[0].mxu0
    %v349 = vadd.f32 %v270, %v348
    %v350 = vpop.f32.mrb[0].mxu0
    %351 = vmatprep.mubr.f32.mxu0 0.0
    %352 = vmatmul.mubr.f32.gmra.mrb[0].mxu0 %v280
    %v353 = vpop.f32.mrb[0].mxu0
    %v354 = vadd.f32 %v272, %v353
    %v355 = vpop.f32.mrb[0].mxu0
    %356 = vdwg.mxu0
    %v357 = vmax.f32 %v349, 0.0
    %v358 = vmax.f32 %v354, 0.0
    %v359 = vadd.f32 %v357, %v40
    %v360 = vadd.f32 %v358, %v41
    %361 = vst.msk [vmem:[#allocation7] sm:$0xff] %vm161, %v359
    %362 = vst.msk [vmem:[#allocation7 + $0x8] sm:$0xff] %vm161, %v360
    // Predicated region
    $region18: #{tpu_custom_call.1} parent=1 // pred_check
      _
    $region19: #{tpu_custom_call.1} parent=1 // pred_check_branch
      %364 = sbr.rel (0) target = $region21
    $region20: #{tpu_custom_call.1} parent=1 // pred_region
      %s366 = ssub.s32 256, 256
      %367 = vsyncadd [#allocation4], %s366
      %s368 = sshll.u32 [#allocation7], 4
      %s369 = int_to_ptr.vmem [resolvable:$true] %s368
      %374 = dma.vmem_to_hbm [thread:$0]  %s369, 256, %s2, [#allocation4], 128, 128, 8
    $region21: #{tpu_custom_call.1} parent=1 // pred_fallthru
      _
    // Predicated region
    $region22: #{tpu_custom_call.1} parent=1 // pred_check
      _
    $region23: #{tpu_custom_call.1} parent=1 // pred_check_branch
      %376 = sbr.rel (0) target = $region25
    $region24: #{tpu_custom_call.1} parent=1 // pred_region
      %377 = dma.done [#allocation4], 256
    $region25: #{tpu_custom_call.1} parent=1 // pred_fallthru
      _
    %378 = vsyncpa [#allocation3], 1
    %379 = vsyncpa [#allocation6], 1
    %380 = vsyncpa [#allocation4], 1

</llo_original>
